<compile_context>
chip_gen: v5e
topology: v5e:2x2
jax: 0.10.0
libtpu: 0.0.40
codegen_flags: <defaults>
</compile_context>

<pallas_src>
import jax
import jax.numpy as jnp
from jax.experimental import pallas as pl
from jax.experimental.pallas import tpu as pltpu

LANE = 128
SUB = 8


def _watermark_encoder_kernel(w_ref, b_ref, img_ref, wm_ref, out_ref):
    # w_ref / b_ref: (1,) f32 in SMEM; img_ref / wm_ref / out_ref: (tr, 128) VMEM tiles
    w = w_ref[0]
    b = b_ref[0]
    # Explicit cast on the store keeps bf16/fp16 inputs correct (compute promotes to f32).
    out_ref[...] = (img_ref[...] + w * wm_ref[...] + b).astype(out_ref.dtype)


def watermark_encoder(img, watermark, w, bias, *, tile_rows=4096):
    """img, watermark: arrays of identical shape (e.g. NCHW); w, bias: (1,) params."""
    assert img.shape == watermark.shape
    orig_shape = img.shape
    orig_dtype = img.dtype

    n = img.size
    pad = (-n) % LANE  # only pad up to the lane width; rows need not be a multiple of 8

    if pad == 0:
        # Fast path: no extra HBM passes — contiguous reshape to a lane-dense slab.
        img_f = img.reshape(-1, LANE)
        wm_f = watermark.reshape(-1, LANE)
    else:
        # Rare path for awkward element counts (adds one pad/slice pass).
        img_f = jnp.pad(img.reshape(-1), (0, pad)).reshape(-1, LANE)
        wm_f = jnp.pad(watermark.reshape(-1), (0, pad)).reshape(-1, LANE)

    rows = img_f.shape[0]

    # Big tiles: per-grid-step overhead (~0.35 us) dominates tiny tiles for a
    # mem-bound kernel.  4096 rows * 128 lanes * 4 B = 2 MiB per buffer;
    # 3 arrays * 2 double-buffers = 12 MiB, within default scoped VMEM on
    # v5e (16 MiB), v6e (32 MiB) and v7x (32 MiB scoped / 64 MiB physical).
    tr = max(SUB, (tile_rows // SUB) * SUB)
    if rows <= tr:
        tr = rows            # full-extent block: always layout-legal, single step
        grid = (1,)
    else:
        grid = (pl.cdiv(rows, tr),)  # partial last block masked by Pallas; no tile shrink

    out_flat = pl.pallas_call(
        _watermark_encoder_kernel,
        out_shape=jax.ShapeDtypeStruct((rows, LANE), orig_dtype),
        grid_spec=pltpu.PrefetchScalarGridSpec(
            num_scalar_prefetch=0,
            grid=grid,
            in_specs=[
                pl.BlockSpec(memory_space=pltpu.MemorySpace.SMEM),  # w
                pl.BlockSpec(memory_space=pltpu.MemorySpace.SMEM),  # bias
                pl.BlockSpec((tr, LANE), lambda i: (i, 0)),          # img tile
                pl.BlockSpec((tr, LANE), lambda i: (i, 0)),          # watermark tile
            ],
            out_specs=pl.BlockSpec((tr, LANE), lambda i: (i, 0)),
        ),
        compiler_params=pltpu.CompilerParams(
            dimension_semantics=("parallel",),  # lets v7x's two TensorCores split the rows
        ),
    )(w.astype(jnp.float32), bias.astype(jnp.float32), img_f, wm_f)

    if pad:
        return out_flat.reshape(-1)[:n].reshape(orig_shape)
    return out_flat.reshape(orig_shape)


if __name__ == "__main__":
    key = jax.random.PRNGKey(0)
    k_img, k_wm, k_w, k_b = jax.random.split(key, 4)

    # NCHW inputs, same shape for img and watermark (module broadcasts trivially).
    img = jax.random.normal(k_img, (2, 4, 16, 16), dtype=jnp.float32)
    watermark = jax.random.normal(k_wm, (2, 4, 16, 16), dtype=jnp.float32)

    # Deterministic synthetic parameters (nn.Parameter(torch.randn(1)) analogues).
    w = jax.random.normal(k_w, (1,), dtype=jnp.float32)
    bias = jax.random.normal(k_b, (1,), dtype=jnp.float32)

    out = watermark_encoder(img, watermark, w, bias)
    out = jax.block_until_ready(out)

    # Reference check against plain JAX semantics of the PyTorch forward.
    ref = img + w[0] * watermark + bias[0]
    assert out.shape == img.shape and out.dtype == img.dtype
    assert jnp.allclose(out, ref, atol=1e-6), "mismatch vs reference"

    print("KERNEL_OK")
</pallas_src>

<mosaic_0001>
module attributes {stable_mosaic.version = 11 : i64} {
  func.func @_watermark_encoder_kernel(%arg0: i32, %arg1: memref<1xf32, #tpu.memory_space<smem>>, %arg2: memref<1xf32, #tpu.memory_space<smem>>, %arg3: memref<16x128xf32, #tpu.memory_space<vmem>>, %arg4: memref<16x128xf32, #tpu.memory_space<vmem>>, %arg5: memref<16x128xf32, #tpu.memory_space<vmem>>) attributes {dimension_semantics = [#tpu.dimension_semantics<parallel>], iteration_bounds = array<i64: 1>, scalar_prefetch = 0 : i64, scratch_operands = 0 : i64, tpu.core_type = #tpu.core_type<tc>, window_params = [{transform_indices = @transform_0, window_bounds = array<i64: 1>}, {transform_indices = @transform_1, window_bounds = array<i64: 1>}, {transform_indices = @transform_2, window_bounds = array<i64: 16, 128>}, {transform_indices = @transform_3, window_bounds = array<i64: 16, 128>}, {transform_indices = @transform_4, window_bounds = array<i64: 16, 128>}]} {
    %c0 = arith.constant 0 : index
    %0 = memref.load %arg1[%c0] : memref<1xf32, #tpu.memory_space<smem>>
    %c0_0 = arith.constant 0 : index
    %1 = memref.load %arg2[%c0_0] : memref<1xf32, #tpu.memory_space<smem>>
    %c0_1 = arith.constant 0 : index
    %c0_2 = arith.constant 0 : index
    %2 = vector.load %arg3[%c0_1, %c0_2] : memref<16x128xf32, #tpu.memory_space<vmem>>, vector<16x128xf32>
    %c0_3 = arith.constant 0 : index
    %c0_4 = arith.constant 0 : index
    %3 = vector.load %arg4[%c0_3, %c0_4] : memref<16x128xf32, #tpu.memory_space<vmem>>, vector<16x128xf32>
    %4 = vector.broadcast %0 : f32 to vector<16x128xf32>
    %5 = arith.mulf %4, %3 : vector<16x128xf32>
    %6 = arith.addf %2, %5 : vector<16x128xf32>
    %7 = vector.broadcast %1 : f32 to vector<16x128xf32>
    %8 = arith.addf %6, %7 : vector<16x128xf32>
    %c0_5 = arith.constant 0 : index
    %c0_6 = arith.constant 0 : index
    %9 = vector.load %arg5[%c0_5, %c0_6] : memref<16x128xf32, #tpu.memory_space<vmem>>, vector<16x128xf32>
    tpu.vector_store %arg5[%c0_5, %c0_6], %8 {strides = array<i32>} : memref<16x128xf32, #tpu.memory_space<vmem>>, vector<16x128xf32>,
    return
  }
  func.func @transform_0(%arg0: i32) -> i32 {
    %c0_i32 = arith.constant 0 : i32
    %c0_i32_0 = arith.constant 0 : i32
    return %c0_i32 : i32
  }
  func.func @transform_1(%arg0: i32) -> i32 {
    %c0_i32 = arith.constant 0 : i32
    %c0_i32_0 = arith.constant 0 : i32
    return %c0_i32 : i32
  }
  func.func @transform_2(%arg0: i32) -> (i32, i32) {
    %c0_i32 = arith.constant 0 : i32
    %c0_i32_0 = arith.constant 0 : i32
    return %arg0, %c0_i32 : i32, i32
  }
  func.func @transform_3(%arg0: i32) -> (i32, i32) {
    %c0_i32 = arith.constant 0 : i32
    %c0_i32_0 = arith.constant 0 : i32
    return %arg0, %c0_i32 : i32, i32
  }
  func.func @transform_4(%arg0: i32) -> (i32, i32) {
    %c0_i32 = arith.constant 0 : i32
    %c0_i32_0 = arith.constant 0 : i32
    return %arg0, %c0_i32 : i32, i32
  }
}

</mosaic_0001>

<llo_original>
// kernel: tpu_custom_call.1
$region0: #{tpu_custom_call.1}
  #allocation0 [shape = 'u32[]', space=smem, size = 0x4, offset = 0x4, fixed_abs, tag = 'smem constant byte address 0x4 - core index']
  #allocation1 [shape = 'u32[72,128]{1,0:T(1,128)}', space=vmem, size = 0x9000, scoped, tag = 'internal scratch']
  #allocation2 [shape = 'f32[1]{0:T(128)S(6)}', space=smem, size = 0x200, scoped, tag = 'scoped memory for tpu_custom_call.1']
  #allocation3 [shape = 'f32[1]{0:T(128)S(6)}', space=smem, size = 0x200, scoped, tag = 'scoped memory for tpu_custom_call.1']
  %s0 = inlined_call_operand.<no memory space> [shape: f32[1], index: 0, kind: input, shape index: {}]
  %s1 = inlined_call_operand.<no memory space> [shape: f32[1], index: 1, kind: input, shape index: {}]
  %s2 = inlined_call_operand.hbm [shape: f32[16,128], index: 2, kind: input, shape index: {}]
  %s3 = inlined_call_operand.hbm [shape: f32[16,128], index: 3, kind: input, shape index: {}]
  %s4 = inlined_call_operand.hbm [shape: f32[16,128], index: 4, kind: output, shape index: {}]
  %s5 = sld [smem:[#allocation0]]
  $region34: #{tpu_custom_call.1} parent=0
    _
  %s7 = ssub.s32 1, %s5
  %s8 = scalar_select 0, %s7, %s5
  %9 = sst [smem:[#allocation2]] %s0
  %10 = sst [smem:[#allocation3]] %s1
  $region1: #{tpu_custom_call.1} parent=0
    #allocation4 [shape = 'u8[8192]{0}', space=vmem, size = 0x2000, scoped, tag = 'input window, operand 2, single buffered']
    #allocation5 [shape = 's32[1]{0}', space=sflag, size = 0x4, scoped, tag = 'scoped memory for tpu_custom_call.1']
    #allocation6 [shape = 's32[1]{0}', space=sflag, size = 0x4, scoped, tag = 'scoped memory for tpu_custom_call.1']
    #allocation7 [shape = 'u8[8192]{0}', space=vmem, size = 0x2000, scoped, tag = 'input window, operand 3, single buffered']
    #allocation8 [shape = 's32[1]{0}', space=sflag, size = 0x4, scoped, tag = 'scoped memory for tpu_custom_call.1']
    #allocation9 [shape = 'u8[8192]{0}', space=vmem, size = 0x2000, scoped, tag = 'output window, operand 0, single buffered']
    %11 = vsyncpa [#allocation5], 0
    %12 = vsyncpa [#allocation8], 0
    %13 = vsyncpa [#allocation6], 0
    // Predicated region
    $region2: #{tpu_custom_call.1} parent=1 // pred_check
      _
    $region3: #{tpu_custom_call.1} parent=1 // pred_check_branch
      %15 = sbr.rel (0) target = $region5
    $region4: #{tpu_custom_call.1} parent=1 // pred_region
      _
    $region5: #{tpu_custom_call.1} parent=1 // pred_fallthru
      _
    // Predicated region
    $region6: #{tpu_custom_call.1} parent=1 // pred_check
      _
    $region7: #{tpu_custom_call.1} parent=1 // pred_check_branch
      %17 = sbr.rel (0) target = $region9
    $region8: #{tpu_custom_call.1} parent=1 // pred_region
      _
    $region9: #{tpu_custom_call.1} parent=1 // pred_fallthru
      _
    // Predicated region
    $region10: #{tpu_custom_call.1} parent=1 // pred_check
      _
    $region11: #{tpu_custom_call.1} parent=1 // pred_check_branch
      %19 = sbr.rel (0) target = $region13
    $region12: #{tpu_custom_call.1} parent=1 // pred_region
      %21 = vsyncadd [#allocation5], 0
      %s22 = sshll.u32 %s2, 4
      %s23 = int_to_ptr.hbm [resolvable:$true] %s22
      %s24 = sshll.u32 [#allocation4], 4
      %s25 = int_to_ptr.vmem [resolvable:$true] %s24
      %30 = dma.hbm_to_vmem [thread:$0]  %s23, 256, %s25, [#allocation5], 128, 128, 8
    $region13: #{tpu_custom_call.1} parent=1 // pred_fallthru
      _
    // Predicated region
    $region14: #{tpu_custom_call.1} parent=1 // pred_check
      _
    $region15: #{tpu_custom_call.1} parent=1 // pred_check_branch
      %32 = sbr.rel (0) target = $region17
    $region16: #{tpu_custom_call.1} parent=1 // pred_region
      %34 = vsyncadd [#allocation8], 0
      %s35 = sshll.u32 %s3, 4
      %s36 = int_to_ptr.hbm [resolvable:$true] %s35
      %s37 = sshll.u32 [#allocation7], 4
      %s38 = int_to_ptr.vmem [resolvable:$true] %s37
      %43 = dma.hbm_to_vmem [thread:$0]  %s36, 256, %s38, [#allocation8], 128, 128, 8
    $region17: #{tpu_custom_call.1} parent=1 // pred_fallthru
      _
    // Predicated region
    $region18: #{tpu_custom_call.1} parent=1 // pred_check
      _
    $region19: #{tpu_custom_call.1} parent=1 // pred_check_branch
      %45 = sbr.rel (0) target = $region21
    $region20: #{tpu_custom_call.1} parent=1 // pred_region
      %47 = dma.done [#allocation5], 256
    $region21: #{tpu_custom_call.1} parent=1 // pred_fallthru
      _
    // Predicated region
    $region22: #{tpu_custom_call.1} parent=1 // pred_check
      _
    $region23: #{tpu_custom_call.1} parent=1 // pred_check_branch
      %49 = sbr.rel (0) target = $region25
    $region24: #{tpu_custom_call.1} parent=1 // pred_region
      %51 = dma.done [#allocation8], 256
    $region25: #{tpu_custom_call.1} parent=1 // pred_fallthru
      _
    %s52 = sld [smem:[#allocation2]]
    %s53 = sld [smem:[#allocation3]]
    %v54 = vld [vmem:[#allocation4] sm:$0xff]
    %v55 = vld [vmem:[#allocation4 + $0x8] sm:$0xff]
    %v56 = vld [vmem:[#allocation7] sm:$0xff]
    %v57 = vld [vmem:[#allocation7 + $0x8] sm:$0xff]
    %v58 = vstv %s52
    %v59 = vmul.f32 %v58, %v56
    %v60 = vmul.f32 %v58, %v57
    %v61 = vadd.f32 %v54, %v59
    %v62 = vadd.f32 %v55, %v60
    %v63 = vstv %s53
    %v64 = vadd.f32 %v61, %v63
    %v65 = vadd.f32 %v62, %v63
    %66 = vst [vmem:[#allocation9] sm:$0xff] %v64
    %67 = vst [vmem:[#allocation9 + $0x8] sm:$0xff] %v65
    // Predicated region
    $region26: #{tpu_custom_call.1} parent=1 // pred_check
      _
    $region27: #{tpu_custom_call.1} parent=1 // pred_check_branch
      %69 = sbr.rel (0) target = $region29
    $region28: #{tpu_custom_call.1} parent=1 // pred_region
      %71 = vsyncadd [#allocation6], 0
      %s72 = sshll.u32 [#allocation9], 4
      %s73 = int_to_ptr.vmem [resolvable:$true] %s72
      %s74 = sshll.u32 %s4, 4
      %s75 = int_to_ptr.hbm [resolvable:$true] %s74
      %80 = dma.vmem_to_hbm [thread:$0]  %s73, 256, %s75, [#allocation6], 128, 128, 8
    $region29: #{tpu_custom_call.1} parent=1 // pred_fallthru
      _
    // Predicated region
    $region30: #{tpu_custom_call.1} parent=1 // pred_check
      _
    $region31: #{tpu_custom_call.1} parent=1 // pred_check_branch
      %82 = sbr.rel (0) target = $region33
    $region32: #{tpu_custom_call.1} parent=1 // pred_region
      %84 = dma.done [#allocation6], 256
    $region33: #{tpu_custom_call.1} parent=1 // pred_fallthru
      _
    %85 = vsyncpa [#allocation5], 1
    %86 = vsyncpa [#allocation8], 1
    %87 = vsyncpa [#allocation6], 1

</llo_original>
